<compile_context>
chip_gen: v6e
topology: v6e:2x2x1
jax: 0.10.0
libtpu: 0.0.40
codegen_flags: <defaults>
</compile_context>

<pallas_src>
import functools

import numpy as np
import jax
import jax.numpy as jnp
from jax.experimental import pallas as pl
from jax.experimental.pallas import tpu as pltpu


# ---------------------------------------------------------------------------
# Fused Pallas kernel: whole CriticBiConv forward for one batch tile.
# ---------------------------------------------------------------------------
def _critic_biconv_kernel(x_ref,
                          w1_ref, b1_ref, w2_ref, b2_ref, wl_ref, bl_ref,
                          wl1_ref, bl1_ref, wz_ref, bz_ref, wo2_ref, bo2_ref,
                          o_ref, *, mxu_dtype):
    def dot(a, b):
        # MXU operands in mxu_dtype (bf16 default, f32 for the tight check);
        # accumulation stays float32.
        return jnp.dot(a.astype(mxu_dtype), b, preferred_element_type=jnp.float32)

    # Stages 1-4: state + action paths fused via block-diagonal weight slabs.
    h = dot(x_ref[...], w1_ref[...]) + b1_ref[...]      # conv(1,W)/(H,1), both paths
    h = jnp.where(h > 0.0, h, 0.01 * h)                 # LeakyReLU(0.01)
    h = jnp.maximum(dot(h, w2_ref[...]) + b2_ref[...], 0.0)   # 1x1 convs + ReLU
    h = dot(h, wl_ref[...]) + bl_ref[...]               # branch Linears (xh + xw)
    h = jnp.maximum(dot(h, wl1_ref[...]) + bl1_ref[...], 0.0)  # per-path l1 + ReLU
    # Stage 5: per-path l2 (row-stacked == xs + xa) with out_net's first Linear
    # folded in offline (no nonlinearity between them).
    h = dot(h, wz_ref[...]) + bz_ref[...]
    h = h * jnp.clip(h + 3.0, 0.0, 6.0) * (1.0 / 6.0)   # Hardswish
    # Final (m -> 1) head on the VPU/XLU: multiply by the single weight row and
    # lane-reduce instead of a nearly empty MXU pass.
    o_ref[...] = jnp.sum(h * wo2_ref[...], axis=-1, keepdims=True) + bo2_ref[...]


# ---------------------------------------------------------------------------
# One-time parameter packing (hoisted out of the forward path)
# ---------------------------------------------------------------------------
def _blkdiag(a, b):
    f32 = jnp.float32
    top = jnp.concatenate([a, jnp.zeros((a.shape[0], b.shape[1]), f32)], axis=1)
    bot = jnp.concatenate([jnp.zeros((b.shape[0], a.shape[1]), f32), b], axis=1)
    return jnp.concatenate([top, bot], axis=0)


def _pack_biconv(p, ci, d1, d2, m):
    """Expand one BiConvNet (image dims (ci,d1,d2)) into dense matrices acting
    on the natural (c,d1,d2) row-major flatten of the image."""
    two_m = 2 * m
    k0 = ci * d1 * d2
    f32 = jnp.float32

    # conv1 of h-branch (kernel (1,d2)) and w-branch (kernel (d1,1)), expanded.
    wh = jnp.transpose(p['c1h_w'][:, :, 0, :], (1, 2, 0))            # (ci, d2, 2m)
    w1h = jnp.einsum('cbj,ae->cabej', wh, jnp.eye(d1, dtype=f32))
    w1h = w1h.reshape(k0, d1 * two_m)
    ww = jnp.transpose(p['c1w_w'][:, :, :, 0], (1, 2, 0))            # (ci, d1, 2m)
    w1w = jnp.einsum('caj,be->cabej', ww, jnp.eye(d2, dtype=f32))
    w1w = w1w.reshape(k0, d2 * two_m)
    w1 = jnp.concatenate([w1h, w1w], axis=1)                         # (k0, (d1+d2)*2m)
    b1 = jnp.concatenate([jnp.tile(p['c1h_b'], d1),
                          jnp.tile(p['c1w_b'], d2)]).reshape(1, -1)

    # 1x1 convs: block-diagonal (per spatial position) matmul.
    w2h = p['c2h_w'][:, :, 0, 0].T                                   # (2m, m)
    w2w = p['c2w_w'][:, :, 0, 0].T
    top = jnp.concatenate([jnp.kron(jnp.eye(d1, dtype=f32), w2h),
                           jnp.zeros((d1 * two_m, d2 * m), f32)], axis=1)
    bot = jnp.concatenate([jnp.zeros((d2 * two_m, d1 * m), f32),
                           jnp.kron(jnp.eye(d2, dtype=f32), w2w)], axis=1)
    w2 = jnp.concatenate([top, bot], axis=0)                         # ((d1+d2)*2m, (d1+d2)*m)
    b2 = jnp.concatenate([jnp.tile(p['c2h_b'], d1),
                          jnp.tile(p['c2w_b'], d2)]).reshape(1, -1)

    # Branch Linears, column-permuted: PyTorch flattens (channel, position);
    # our layout is (position, channel).  Stacking both gives xh + xw in one matmul.
    out = p['lh_w'].shape[0]
    wlh = p['lh_w'].reshape(out, m, d1).transpose(2, 1, 0).reshape(d1 * m, out)
    wlw = p['lw_w'].reshape(out, m, d2).transpose(2, 1, 0).reshape(d2 * m, out)
    wl = jnp.concatenate([wlh, wlw], axis=0)                         # ((d1+d2)*m, 4m)
    bl = (p['lh_b'] + p['lw_b']).reshape(1, -1)
    return w1, b1, w2, b2, wl, bl


def pack_params(params, mid_dim, state_dim, mxu_dtype=jnp.bfloat16):
    """Pre-pack all weights into kernel-ready slabs.  Call once, reuse per step."""
    c, h, w = state_dim
    m = mid_dim
    s = _pack_biconv(params['s_bi'], c, h, w, m)      # state image (C, H, W)
    a = _pack_biconv(params['a_bi'], c, w, h, m)      # action image (C, W, H)

    # Stages 1-4: state/action paths fused as block-diagonal weights acting on
    # the column-concatenated input [state_flat | action].
    w1, b1 = _blkdiag(s[0], a[0]), jnp.concatenate([s[1], a[1]], axis=1)
    w2, b2 = _blkdiag(s[2], a[2]), jnp.concatenate([s[3], a[3]], axis=1)
    wl, bl = _blkdiag(s[4], a[4]), jnp.concatenate([s[5], a[5]], axis=1)
    wl1 = _blkdiag(params['s_l1_w'].T, params['a_l1_w'].T)
    bl1 = jnp.concatenate([params['s_l1_b'], params['a_l1_b']]).reshape(1, -1)

    # Stage 5: row-stacked l2 weights give xs + xa in one matmul; fold out_net's
    # first Linear in (no nonlinearity in between): wz = [l2_s; l2_a] @ o1.
    wl2 = jnp.concatenate([params['s_l2_w'].T, params['a_l2_w'].T], axis=0)   # (4m, m)
    bl2 = (params['s_l2_b'] + params['a_l2_b']).reshape(1, -1)
    wo1 = params['o1_w'].T
    wz = wl2 @ wo1                                                            # (4m, m)
    bz = bl2 @ wo1 + params['o1_b'].reshape(1, -1)

    # Final head stays f32 (done on the VPU, not the MXU).
    wo2r = params['o2_w'].reshape(1, -1).astype(jnp.float32)                  # (1, m)
    bo2 = params['o2_b'].reshape(1, 1).astype(jnp.float32)

    mats = [x_.astype(mxu_dtype) for x_ in (w1, w2, wl, wl1, wz)]
    bias = [x_.astype(jnp.float32) for x_ in (b1, b2, bl, bl1, bz)]
    w1, w2, wl, wl1, wz = mats
    b1, b2, bl, bl1, bz = bias
    return (w1, b1, w2, b2, wl, bl, wl1, bl1, wz, bz, wo2r, bo2)


# ---------------------------------------------------------------------------
# Forward: one fused, batch-tiled pallas_call
# ---------------------------------------------------------------------------
def critic_biconv_forward(packed, state, action, *, mxu_dtype=jnp.bfloat16,
                          tile_n=None):
    n = state.shape[0]
    k0 = int(np.prod(state.shape[1:]))
    assert action.shape == (n, k0)

    # Single fused input [state_flat | action]: state flatten is the free
    # row-major NCHW flatten; action is already (N, C*W*H).  One small concat
    # enables the block-diagonal single-dot-per-stage chain in the kernel.
    x = jnp.concatenate([state.reshape(n, k0).astype(jnp.float32),
                         action.astype(jnp.float32)], axis=1)         # (N, 2*k0)

    if tile_n is None:
        # Multiple of 16 (bf16 sublane packing), capped at 1024 to amortize the
        # ~0.35us per-grid-step overhead, and >= 2 grid steps once n >= 32 so
        # both v7x TensorCores get work on the "parallel" batch axis.
        tile_n = min(1024, max(16, 16 * pl.cdiv(pl.cdiv(n, 2), 16)))
    grid_n = pl.cdiv(n, tile_n)

    if n < tile_n:
        # Tiny batch: pad so the single block covers the array (cheap copy).
        # Larger batches are NOT padded: the partial last block's out-of-bounds
        # rows are garbage and are sliced off by out[:n] below.
        x = jnp.pad(x, ((0, tile_n - n), (0, 0)))
    n_rows = x.shape[0]

    data_spec = pl.BlockSpec((tile_n, 2 * k0), lambda i: (i, 0))

    def const_spec(arr):                       # full-array block, fetched once
        nd = arr.ndim
        return pl.BlockSpec(arr.shape, lambda i, _nd=nd: (0,) * _nd)

    in_specs = [data_spec] + [const_spec(wgt) for wgt in packed]

    # Advisory cost estimate: 5 matmuls (biases/head row vectors have shape[0]==1
    # and are skipped) + negligible VPU head.
    rows = grid_n * tile_n
    flops = sum(2 * rows * wgt.shape[0] * wgt.shape[1]
                for wgt in packed if wgt.shape[0] > 1)
    bytes_accessed = 4 * rows * (2 * k0 + 1) + sum(
        int(np.prod(wgt.shape)) * wgt.dtype.itemsize for wgt in packed)

    out = pl.pallas_call(
        functools.partial(_critic_biconv_kernel, mxu_dtype=mxu_dtype),
        out_shape=jax.ShapeDtypeStruct((n_rows, 1), jnp.float32),
        grid=(grid_n,),
        in_specs=in_specs,
        out_specs=pl.BlockSpec((tile_n, 1), lambda i: (i, 0)),
        compiler_params=pltpu.CompilerParams(
            dimension_semantics=("parallel",)),
        cost_estimate=pl.CostEstimate(flops=int(flops), transcendentals=0,
                                      bytes_accessed=int(bytes_accessed)),
    )(x, *packed)
    # TODO(synk): final output is inherently (N, 1) (lane-sparse stores); padding it
    # to 128 lanes would only waste HBM writes at these sizes.
    return out[:n]


# ---------------------------------------------------------------------------
# Deterministic parameter init (PyTorch-shaped tensors)
# ---------------------------------------------------------------------------
def init_params(key, mid_dim, state_dim):
    c, h, w = state_dim
    m = mid_dim
    keys = iter(jax.random.split(key, 64))

    def U(shape, scale=0.1):
        return jax.random.uniform(next(keys), shape, jnp.float32, -scale, scale)

    def biconv(inp):
        ci, d1, d2 = inp
        out = 4 * m
        return dict(
            c1h_w=U((2 * m, ci, 1, d2)), c1h_b=U((2 * m,)),
            c2h_w=U((m, 2 * m, 1, 1)),   c2h_b=U((m,)),
            lh_w=U((out, d1 * m)),       lh_b=U((out,)),
            c1w_w=U((2 * m, ci, d1, 1)), c1w_b=U((2 * m,)),
            c2w_w=U((m, 2 * m, 1, 1)),   c2w_b=U((m,)),
            lw_w=U((out, d2 * m)),       lw_b=U((out,)),
        )

    return dict(
        s_bi=biconv((c, h, w)),
        a_bi=biconv((c, w, h)),            # action reshaped to (C, W, H)
        s_l1_w=U((2 * m, 4 * m)), s_l1_b=U((2 * m,)),
        s_l2_w=U((m, 2 * m)),     s_l2_b=U((m,)),
        a_l1_w=U((2 * m, 4 * m)), a_l1_b=U((2 * m,)),
        a_l2_w=U((m, 2 * m)),     a_l2_b=U((m,)),
        o1_w=U((m, m)),           o1_b=U((m,)),
        # mimic layer_norm(out_net[-1], std=0.1): small final-layer init
        o2_w=U((1, m), scale=0.01), o2_b=U((1,), scale=0.01),
    )


# ---------------------------------------------------------------------------
# Pure-JAX reference (mirrors the PyTorch module op-for-op) for validation
# ---------------------------------------------------------------------------
def reference_forward(params, state, action, mid_dim, state_dim):
    c, h, w = state_dim
    n = state.shape[0]

    def conv2d(x, wgt, b):
        y = jax.lax.conv_general_dilated(
            x, wgt, (1, 1), 'VALID', dimension_numbers=('NCHW', 'OIHW', 'NCHW'))
        return y + b[None, :, None, None]

    def linear(x, wgt, b):
        return x @ wgt.T + b

    def leaky(x):
        return jnp.where(x > 0, x, 0.01 * x)

    def biconv(img, p):
        xh = leaky(conv2d(img, p['c1h_w'], p['c1h_b']))
        xh = jnp.maximum(conv2d(xh, p['c2h_w'], p['c2h_b']), 0.0)
        xh = linear(xh.reshape(n, -1), p['lh_w'], p['lh_b'])
        xw = leaky(conv2d(img, p['c1w_w'], p['c1w_b']))
        xw = jnp.maximum(conv2d(xw, p['c2w_w'], p['c2w_b']), 0.0)
        xw = linear(xw.reshape(n, -1), p['lw_w'], p['lw_b'])
        return xh + xw

    xs = biconv(state, params['s_bi'])
    xs = jnp.maximum(linear(xs, params['s_l1_w'], params['s_l1_b']), 0.0)
    xs = linear(xs, params['s_l2_w'], params['s_l2_b'])

    xa = biconv(action.reshape(n, c, w, h), params['a_bi'])
    xa = jnp.maximum(linear(xa, params['a_l1_w'], params['a_l1_b']), 0.0)
    xa = linear(xa, params['a_l2_w'], params['a_l2_b'])

    z = linear(xs + xa, params['o1_w'], params['o1_b'])
    z = z * jnp.clip(z + 3.0, 0.0, 6.0) / 6.0
    return linear(z, params['o2_w'], params['o2_b'])


# ---------------------------------------------------------------------------
if __name__ == "__main__":
    mid_dim = 8
    state_dim = (2, 4, 4)                        # (C, H, W)
    action_dim = int(np.prod(state_dim))         # module asserts C*H*W
    key = jax.random.PRNGKey(0)
    k_par, k_s, k_a, k_s2, k_a2 = jax.random.split(key, 5)
    params = init_params(k_par, mid_dim, state_dim)

    # ---- tiny batch (padded single-tile path), f32 MXU operands: tight check ----
    batch = 2
    state = jax.random.normal(k_s, (batch,) + state_dim, jnp.float32)
    action = jax.random.normal(k_a, (batch, action_dim), jnp.float32)
    ref = reference_forward(params, state, action, mid_dim, state_dim)

    packed_f32 = pack_params(params, mid_dim, state_dim, mxu_dtype=jnp.float32)
    fwd_f32 = jax.jit(functools.partial(critic_biconv_forward, mxu_dtype=jnp.float32))
    out_f32 = jax.block_until_ready(fwd_f32(packed_f32, state, action))
    assert out_f32.shape == (batch, 1)
    np.testing.assert_allclose(np.asarray(out_f32), np.asarray(ref),
                               rtol=1e-4, atol=1e-4)

    # ---- larger batch (multi-step grid + partial last block), bf16 MXU default ----
    batch2 = 40
    state2 = jax.random.normal(k_s2, (batch2,) + state_dim, jnp.float32)
    action2 = jax.random.normal(k_a2, (batch2, action_dim), jnp.float32)
    ref2 = reference_forward(params, state2, action2, mid_dim, state_dim)

    packed_bf16 = pack_params(params, mid_dim, state_dim)          # bf16 default
    fwd_bf16 = jax.jit(functools.partial(critic_biconv_forward, tile_n=16))
    out_bf16 = jax.block_until_ready(fwd_bf16(packed_bf16, state2, action2))
    assert out_bf16.shape == (batch2, 1)
    np.testing.assert_allclose(np.asarray(out_bf16), np.asarray(ref2),
                               rtol=5e-2, atol=5e-2)

    print("KERNEL_OK")
</pallas_src>

<mosaic_0001>
module attributes {stable_mosaic.version = 11 : i64} {
  func.func @_critic_biconv_kernel(%arg0: i32, %arg1: memref<16x64xf32, #tpu.memory_space<vmem>>, %arg2: memref<64x256xf32, #tpu.memory_space<vmem>>, %arg3: memref<1x256xf32, #tpu.memory_space<vmem>>, %arg4: memref<256x128xf32, #tpu.memory_space<vmem>>, %arg5: memref<1x128xf32, #tpu.memory_space<vmem>>, %arg6: memref<128x64xf32, #tpu.memory_space<vmem>>, %arg7: memref<1x64xf32, #tpu.memory_space<vmem>>, %arg8: memref<64x32xf32, #tpu.memory_space<vmem>>, %arg9: memref<1x32xf32, #tpu.memory_space<vmem>>, %arg10: memref<32x8xf32, #tpu.memory_space<vmem>>, %arg11: memref<1x8xf32, #tpu.memory_space<vmem>>, %arg12: memref<1x8xf32, #tpu.memory_space<vmem>>, %arg13: memref<1x1xf32, #tpu.memory_space<vmem>>, %arg14: memref<16x1xf32, #tpu.memory_space<vmem>>) attributes {dimension_semantics = [#tpu.dimension_semantics<parallel>], iteration_bounds = array<i64: 1>, scalar_prefetch = 0 : i64, scratch_operands = 0 : i64, tpu.core_type = #tpu.core_type<tc>, window_params = [{transform_indices = @transform_0, window_bounds = array<i64: 16, 64>}, {pipeline_mode = #tpu.pipeline_mode<synchronous>, transform_indices = @transform_1, window_bounds = array<i64: 64, 256>}, {pipeline_mode = #tpu.pipeline_mode<synchronous>, transform_indices = @transform_2, window_bounds = array<i64: 1, 256>}, {pipeline_mode = #tpu.pipeline_mode<synchronous>, transform_indices = @transform_3, window_bounds = array<i64: 256, 128>}, {pipeline_mode = #tpu.pipeline_mode<synchronous>, transform_indices = @transform_4, window_bounds = array<i64: 1, 128>}, {pipeline_mode = #tpu.pipeline_mode<synchronous>, transform_indices = @transform_5, window_bounds = array<i64: 128, 64>}, {pipeline_mode = #tpu.pipeline_mode<synchronous>, transform_indices = @transform_6, window_bounds = array<i64: 1, 64>}, {pipeline_mode = #tpu.pipeline_mode<synchronous>, transform_indices = @transform_7, window_bounds = array<i64: 64, 32>}, {pipeline_mode = #tpu.pipeline_mode<synchronous>, transform_indices = @transform_8, window_bounds = array<i64: 1, 32>}, {pipeline_mode = #tpu.pipeline_mode<synchronous>, transform_indices = @transform_9, window_bounds = array<i64: 32, 8>}, {pipeline_mode = #tpu.pipeline_mode<synchronous>, transform_indices = @transform_10, window_bounds = array<i64: 1, 8>}, {pipeline_mode = #tpu.pipeline_mode<synchronous>, transform_indices = @transform_11, window_bounds = array<i64: 1, 8>}, {pipeline_mode = #tpu.pipeline_mode<synchronous>, transform_indices = @transform_12, window_bounds = array<i64: 1, 1>}, {transform_indices = @transform_13, window_bounds = array<i64: 16, 1>}]} {
    %c0 = arith.constant 0 : index
    %c0_0 = arith.constant 0 : index
    %0 = vector.load %arg1[%c0, %c0_0] : memref<16x64xf32, #tpu.memory_space<vmem>>, vector<16x64xf32>
    %c0_1 = arith.constant 0 : index
    %c0_2 = arith.constant 0 : index
    %1 = vector.load %arg2[%c0_1, %c0_2] : memref<64x256xf32, #tpu.memory_space<vmem>>, vector<64x256xf32>
    %cst = arith.constant dense<0.000000e+00> : vector<16x256xf32>
    %2 = tpu.matmul %0, %1, %cst {dimension_numbers = #tpu.dot_dimension_numbers<[1], [0], [0], [1], [0, 0, 1, 1], [], []>} : vector<16x64xf32>, vector<64x256xf32>, vector<16x256xf32> -> vector<16x256xf32>
    %c0_3 = arith.constant 0 : index
    %c0_4 = arith.constant 0 : index
    %3 = vector.load %arg3[%c0_3, %c0_4] : memref<1x256xf32, #tpu.memory_space<vmem>>, vector<1x256xf32>
    %4 = vector.broadcast %3 : vector<1x256xf32> to vector<16x256xf32>
    %5 = arith.addf %2, %4 : vector<16x256xf32>
    %cst_5 = arith.constant 0.000000e+00 : f32
    %6 = vector.broadcast %cst_5 : f32 to vector<16x256xf32>
    %7 = arith.cmpf ogt, %5, %6 : vector<16x256xf32>
    %cst_6 = arith.constant 0.00999999977 : f32
    %8 = vector.broadcast %cst_6 : f32 to vector<16x256xf32>
    %9 = arith.mulf %8, %5 : vector<16x256xf32>
    %10 = arith.select %7, %5, %9 : vector<16x256xi1>, vector<16x256xf32>
    %c0_7 = arith.constant 0 : index
    %c0_8 = arith.constant 0 : index
    %11 = vector.load %arg4[%c0_7, %c0_8] : memref<256x128xf32, #tpu.memory_space<vmem>>, vector<256x128xf32>
    %cst_9 = arith.constant dense<0.000000e+00> : vector<16x128xf32>
    %12 = tpu.matmul %10, %11, %cst_9 {dimension_numbers = #tpu.dot_dimension_numbers<[1], [0], [0], [1], [0, 0, 1, 1], [], []>} : vector<16x256xf32>, vector<256x128xf32>, vector<16x128xf32> -> vector<16x128xf32>
    %c0_10 = arith.constant 0 : index
    %c0_11 = arith.constant 0 : index
    %13 = vector.load %arg5[%c0_10, %c0_11] : memref<1x128xf32, #tpu.memory_space<vmem>>, vector<1x128xf32>
    %14 = vector.broadcast %13 : vector<1x128xf32> to vector<16x128xf32>
    %15 = arith.addf %12, %14 : vector<16x128xf32>
    %cst_12 = arith.constant 0.000000e+00 : f32
    %16 = vector.broadcast %cst_12 : f32 to vector<16x128xf32>
    %17 = arith.maximumf %15, %16 : vector<16x128xf32>
    %c0_13 = arith.constant 0 : index
    %c0_14 = arith.constant 0 : index
    %18 = vector.load %arg6[%c0_13, %c0_14] : memref<128x64xf32, #tpu.memory_space<vmem>>, vector<128x64xf32>
    %cst_15 = arith.constant dense<0.000000e+00> : vector<16x64xf32>
    %19 = tpu.matmul %17, %18, %cst_15 {dimension_numbers = #tpu.dot_dimension_numbers<[1], [0], [0], [1], [0, 0, 1, 1], [], []>} : vector<16x128xf32>, vector<128x64xf32>, vector<16x64xf32> -> vector<16x64xf32>
    %c0_16 = arith.constant 0 : index
    %c0_17 = arith.constant 0 : index
    %20 = vector.load %arg7[%c0_16, %c0_17] : memref<1x64xf32, #tpu.memory_space<vmem>>, vector<1x64xf32>
    %21 = vector.broadcast %20 : vector<1x64xf32> to vector<16x64xf32>
    %22 = arith.addf %19, %21 : vector<16x64xf32>
    %c0_18 = arith.constant 0 : index
    %c0_19 = arith.constant 0 : index
    %23 = vector.load %arg8[%c0_18, %c0_19] : memref<64x32xf32, #tpu.memory_space<vmem>>, vector<64x32xf32>
    %cst_20 = arith.constant dense<0.000000e+00> : vector<16x32xf32>
    %24 = tpu.matmul %22, %23, %cst_20 {dimension_numbers = #tpu.dot_dimension_numbers<[1], [0], [0], [1], [0, 0, 1, 1], [], []>} : vector<16x64xf32>, vector<64x32xf32>, vector<16x32xf32> -> vector<16x32xf32>
    %c0_21 = arith.constant 0 : index
    %c0_22 = arith.constant 0 : index
    %25 = vector.load %arg9[%c0_21, %c0_22] : memref<1x32xf32, #tpu.memory_space<vmem>>, vector<1x32xf32>
    %26 = vector.broadcast %25 : vector<1x32xf32> to vector<16x32xf32>
    %27 = arith.addf %24, %26 : vector<16x32xf32>
    %cst_23 = arith.constant 0.000000e+00 : f32
    %28 = vector.broadcast %cst_23 : f32 to vector<16x32xf32>
    %29 = arith.maximumf %27, %28 : vector<16x32xf32>
    %c0_24 = arith.constant 0 : index
    %c0_25 = arith.constant 0 : index
    %30 = vector.load %arg10[%c0_24, %c0_25] : memref<32x8xf32, #tpu.memory_space<vmem>>, vector<32x8xf32>
    %cst_26 = arith.constant dense<0.000000e+00> : vector<16x8xf32>
    %31 = tpu.matmul %29, %30, %cst_26 {dimension_numbers = #tpu.dot_dimension_numbers<[1], [0], [0], [1], [0, 0, 1, 1], [], []>} : vector<16x32xf32>, vector<32x8xf32>, vector<16x8xf32> -> vector<16x8xf32>
    %c0_27 = arith.constant 0 : index
    %c0_28 = arith.constant 0 : index
    %32 = vector.load %arg11[%c0_27, %c0_28] : memref<1x8xf32, #tpu.memory_space<vmem>>, vector<1x8xf32>
    %33 = vector.broadcast %32 : vector<1x8xf32> to vector<16x8xf32>
    %34 = arith.addf %31, %33 : vector<16x8xf32>
    %cst_29 = arith.constant 3.000000e+00 : f32
    %35 = vector.broadcast %cst_29 : f32 to vector<16x8xf32>
    %36 = arith.addf %34, %35 : vector<16x8xf32>
    %cst_30 = arith.constant 0.000000e+00 : f32
    %cst_31 = arith.constant 6.000000e+00 : f32
    %37 = vector.broadcast %cst_30 : f32 to vector<16x8xf32>
    %38 = arith.maximumf %37, %36 : vector<16x8xf32>
    %39 = vector.broadcast %cst_31 : f32 to vector<16x8xf32>
    %40 = arith.minimumf %39, %38 : vector<16x8xf32>
    %41 = arith.mulf %34, %40 : vector<16x8xf32>
    %cst_32 = arith.constant 0.166666672 : f32
    %42 = vector.broadcast %cst_32 : f32 to vector<16x8xf32>
    %43 = arith.mulf %41, %42 : vector<16x8xf32>
    %c0_33 = arith.constant 0 : index
    %c0_34 = arith.constant 0 : index
    %44 = vector.load %arg12[%c0_33, %c0_34] : memref<1x8xf32, #tpu.memory_space<vmem>>, vector<1x8xf32>
    %45 = vector.broadcast %44 : vector<1x8xf32> to vector<16x8xf32>
    %46 = arith.mulf %43, %45 : vector<16x8xf32>
    %cst_35 = arith.constant dense<0.000000e+00> : vector<16xf32>
    %47 = vector.multi_reduction <add>, %46, %cst_35 [1] : vector<16x8xf32> to vector<16xf32>
    %48 = vector.shape_cast %47 : vector<16xf32> to vector<16x1xf32>
    %c0_36 = arith.constant 0 : index
    %c0_37 = arith.constant 0 : index
    %49 = vector.load %arg13[%c0_36, %c0_37] : memref<1x1xf32, #tpu.memory_space<vmem>>, vector<1x1xf32>
    %50 = vector.broadcast %49 : vector<1x1xf32> to vector<16x1xf32>
    %51 = arith.addf %48, %50 : vector<16x1xf32>
    %c0_38 = arith.constant 0 : index
    %c0_39 = arith.constant 0 : index
    %52 = vector.load %arg14[%c0_38, %c0_39] : memref<16x1xf32, #tpu.memory_space<vmem>>, vector<16x1xf32>
    tpu.vector_store %arg14[%c0_38, %c0_39], %51 {strides = array<i32>} : memref<16x1xf32, #tpu.memory_space<vmem>>, vector<16x1xf32>,
    return
  }
  func.func @transform_0(%arg0: i32) -> (i32, i32) {
    %c0_i32 = arith.constant 0 : i32
    %c0_i32_0 = arith.constant 0 : i32
    return %arg0, %c0_i32 : i32, i32
  }
  func.func @transform_1(%arg0: i32) -> (i32, i32) {
    %c0_i32 = arith.constant 0 : i32
    %c0_i32_0 = arith.constant 0 : i32
    %c0_i32_1 = arith.constant 0 : i32
    return %c0_i32, %c0_i32_0 : i32, i32
  }
  func.func @transform_2(%arg0: i32) -> (i32, i32) {
    %c0_i32 = arith.constant 0 : i32
    %c0_i32_0 = arith.constant 0 : i32
    %c0_i32_1 = arith.constant 0 : i32
    return %c0_i32, %c0_i32_0 : i32, i32
  }
  func.func @transform_3(%arg0: i32) -> (i32, i32) {
    %c0_i32 = arith.constant 0 : i32
    %c0_i32_0 = arith.constant 0 : i32
    %c0_i32_1 = arith.constant 0 : i32
    return %c0_i32, %c0_i32_0 : i32, i32
  }
  func.func @transform_4(%arg0: i32) -> (i32, i32) {
    %c0_i32 = arith.constant 0 : i32
    %c0_i32_0 = arith.constant 0 : i32
    %c0_i32_1 = arith.constant 0 : i32
    return %c0_i32, %c0_i32_0 : i32, i32
  }
  func.func @transform_5(%arg0: i32) -> (i32, i32) {
    %c0_i32 = arith.constant 0 : i32
    %c0_i32_0 = arith.constant 0 : i32
    %c0_i32_1 = arith.constant 0 : i32
    return %c0_i32, %c0_i32_0 : i32, i32
  }
  func.func @transform_6(%arg0: i32) -> (i32, i32) {
    %c0_i32 = arith.constant 0 : i32
    %c0_i32_0 = arith.constant 0 : i32
    %c0_i32_1 = arith.constant 0 : i32
    return %c0_i32, %c0_i32_0 : i32, i32
  }
  func.func @transform_7(%arg0: i32) -> (i32, i32) {
    %c0_i32 = arith.constant 0 : i32
    %c0_i32_0 = arith.constant 0 : i32
    %c0_i32_1 = arith.constant 0 : i32
    return %c0_i32, %c0_i32_0 : i32, i32
  }
  func.func @transform_8(%arg0: i32) -> (i32, i32) {
    %c0_i32 = arith.constant 0 : i32
    %c0_i32_0 = arith.constant 0 : i32
    %c0_i32_1 = arith.constant 0 : i32
    return %c0_i32, %c0_i32_0 : i32, i32
  }
  func.func @transform_9(%arg0: i32) -> (i32, i32) {
    %c0_i32 = arith.constant 0 : i32
    %c0_i32_0 = arith.constant 0 : i32
    %c0_i32_1 = arith.constant 0 : i32
    return %c0_i32, %c0_i32_0 : i32, i32
  }
  func.func @transform_10(%arg0: i32) -> (i32, i32) {
    %c0_i32 = arith.constant 0 : i32
    %c0_i32_0 = arith.constant 0 : i32
    %c0_i32_1 = arith.constant 0 : i32
    return %c0_i32, %c0_i32_0 : i32, i32
  }
  func.func @transform_11(%arg0: i32) -> (i32, i32) {
    %c0_i32 = arith.constant 0 : i32
    %c0_i32_0 = arith.constant 0 : i32
    %c0_i32_1 = arith.constant 0 : i32
    return %c0_i32, %c0_i32_0 : i32, i32
  }
  func.func @transform_12(%arg0: i32) -> (i32, i32) {
    %c0_i32 = arith.constant 0 : i32
    %c0_i32_0 = arith.constant 0 : i32
    %c0_i32_1 = arith.constant 0 : i32
    return %c0_i32, %c0_i32_0 : i32, i32
  }
  func.func @transform_13(%arg0: i32) -> (i32, i32) {
    %c0_i32 = arith.constant 0 : i32
    %c0_i32_0 = arith.constant 0 : i32
    return %arg0, %c0_i32 : i32, i32
  }
}

</mosaic_0001>

<llo_original>
// kernel: critic_biconv_forward.1
$region0: #{critic_biconv_forward.1}
  #allocation0 [shape = 'u32[]', space=smem, size = 0x4, offset = 0x4, fixed_abs, tag = 'smem constant byte address 0x4 - core index']
  #allocation1 [shape = 'u32[144,128]{1,0:T(1,128)}', space=vmem, size = 0x12000, scoped, tag = 'internal scratch']
  #allocation2 [shape = 'f32[1,1]{1,0:T(1,128)S(1)}', space=vmem, size = 0x200, scoped, tag = 'scoped memory for critic_biconv_forward.1']
  %s0 = inlined_call_operand.vmem [shape: f32[16,64], index: 0, kind: input, shape index: {}]
  %s1 = inlined_call_operand.hbm [shape: f32[64,256], index: 1, kind: input, shape index: {}]
  %s2 = inlined_call_operand.vmem [shape: f32[1,256], index: 2, kind: input, shape index: {}]
  %s3 = inlined_call_operand.vmem [shape: f32[256,128], index: 3, kind: input, shape index: {}]
  %s4 = inlined_call_operand.vmem [shape: f32[1,128], index: 4, kind: input, shape index: {}]
  %s5 = inlined_call_operand.vmem [shape: f32[128,64], index: 5, kind: input, shape index: {}]
  %s6 = inlined_call_operand.vmem [shape: f32[1,64], index: 6, kind: input, shape index: {}]
  %s7 = inlined_call_operand.vmem [shape: f32[64,32], index: 7, kind: input, shape index: {}]
  %s8 = inlined_call_operand.vmem [shape: f32[1,32], index: 8, kind: input, shape index: {}]
  %s9 = inlined_call_operand.vmem [shape: f32[32,8], index: 9, kind: input, shape index: {}]
  %s10 = inlined_call_operand.vmem [shape: f32[1,8], index: 10, kind: input, shape index: {}]
  %s11 = inlined_call_operand.vmem [shape: f32[1,8], index: 11, kind: input, shape index: {}]
  %s12 = inlined_call_operand.<no memory space> [shape: f32[1,1], index: 12, kind: input, shape index: {}]
  %s13 = inlined_call_operand.vmem [shape: f32[16,1], index: 13, kind: output, shape index: {}]
  %s14 = sld [smem:[#allocation0]]
  $region66: #{critic_biconv_forward.1} parent=0
    _
  %s16 = ssub.s32 1, %s14
  %s17 = scalar_select 0, %s16, %s14
  %v18 = vstv %s12
  %19 = vst [vmem:[#allocation2] sm:$0x1] %v18
  $region1: #{critic_biconv_forward.1} parent=0
    #allocation3 [shape = 'u8[65536]{0}', space=vmem, size = 0x10000, scoped, tag = 'input window, operand 1, single buffered']
    #allocation4 [shape = 's32[1]{0}', space=sflag, size = 0x4, scoped, tag = 'scoped memory for critic_biconv_forward.1']
    %20 = vsyncpa [#allocation4], 0
    // Predicated region
    $region2: #{critic_biconv_forward.1} parent=1 // pred_check
      _
    $region3: #{critic_biconv_forward.1} parent=1 // pred_check_branch
      %22 = sbr.rel (0) target = $region5
    $region4: #{critic_biconv_forward.1} parent=1 // pred_region
      _
    $region5: #{critic_biconv_forward.1} parent=1 // pred_fallthru
      _
    // Predicated region
    $region6: #{critic_biconv_forward.1} parent=1 // pred_check
      _
    $region7: #{critic_biconv_forward.1} parent=1 // pred_check_branch
      %24 = sbr.rel (0) target = $region9
    $region8: #{critic_biconv_forward.1} parent=1 // pred_region
      %s26 = ssub.s32 2048, 2048
      %27 = vsyncadd [#allocation4], %s26
      %s28 = sshll.u32 [#allocation3], 4
      %s29 = int_to_ptr.vmem [resolvable:$true] %s28
      %34 = dma.hbm_to_vmem [thread:$0]  %s1, 2048, %s29, [#allocation4], 256, 256, 16
    $region9: #{critic_biconv_forward.1} parent=1 // pred_fallthru
      _
    // Predicated region
    $region10: #{critic_biconv_forward.1} parent=1 // pred_check
      _
    $region11: #{critic_biconv_forward.1} parent=1 // pred_check_branch
      %36 = sbr.rel (0) target = $region13
    $region12: #{critic_biconv_forward.1} parent=1 // pred_region
      _
    $region13: #{critic_biconv_forward.1} parent=1 // pred_fallthru
      _
    // Predicated region
    $region14: #{critic_biconv_forward.1} parent=1 // pred_check
      _
    $region15: #{critic_biconv_forward.1} parent=1 // pred_check_branch
      %38 = sbr.rel (0) target = $region17
    $region16: #{critic_biconv_forward.1} parent=1 // pred_region
      _
    $region17: #{critic_biconv_forward.1} parent=1 // pred_fallthru
      _
    // Predicated region
    $region18: #{critic_biconv_forward.1} parent=1 // pred_check
      _
    $region19: #{critic_biconv_forward.1} parent=1 // pred_check_branch
      %40 = sbr.rel (0) target = $region21
    $region20: #{critic_biconv_forward.1} parent=1 // pred_region
      _
    $region21: #{critic_biconv_forward.1} parent=1 // pred_fallthru
      _
    // Predicated region
    $region22: #{critic_biconv_forward.1} parent=1 // pred_check
      _
    $region23: #{critic_biconv_forward.1} parent=1 // pred_check_branch
      %42 = sbr.rel (0) target = $region25
    $region24: #{critic_biconv_forward.1} parent=1 // pred_region
      _
    $region25: #{critic_biconv_forward.1} parent=1 // pred_fallthru
      _
    // Predicated region
    $region26: #{critic_biconv_forward.1} parent=1 // pred_check
      _
    $region27: #{critic_biconv_forward.1} parent=1 // pred_check_branch
      %44 = sbr.rel (0) target = $region29
    $region28: #{critic_biconv_forward.1} parent=1 // pred_region
      _
    $region29: #{critic_biconv_forward.1} parent=1 // pred_fallthru
      _
    // Predicated region
    $region30: #{critic_biconv_forward.1} parent=1 // pred_check
      _
    $region31: #{critic_biconv_forward.1} parent=1 // pred_check_branch
      %46 = sbr.rel (0) target = $region33
    $region32: #{critic_biconv_forward.1} parent=1 // pred_region
      _
    $region33: #{critic_biconv_forward.1} parent=1 // pred_fallthru
      _
    // Predicated region
    $region34: #{critic_biconv_forward.1} parent=1 // pred_check
      _
    $region35: #{critic_biconv_forward.1} parent=1 // pred_check_branch
      %48 = sbr.rel (0) target = $region37
    $region36: #{critic_biconv_forward.1} parent=1 // pred_region
      _
    $region37: #{critic_biconv_forward.1} parent=1 // pred_fallthru
      _
    // Predicated region
    $region38: #{critic_biconv_forward.1} parent=1 // pred_check
      _
    $region39: #{critic_biconv_forward.1} parent=1 // pred_check_branch
      %50 = sbr.rel (0) target = $region41
    $region40: #{critic_biconv_forward.1} parent=1 // pred_region
      _
    $region41: #{critic_biconv_forward.1} parent=1 // pred_fallthru
      _
    // Predicated region
    $region42: #{critic_biconv_forward.1} parent=1 // pred_check
      _
    $region43: #{critic_biconv_forward.1} parent=1 // pred_check_branch
      %52 = sbr.rel (0) target = $region45
    $region44: #{critic_biconv_forward.1} parent=1 // pred_region
      _
    $region45: #{critic_biconv_forward.1} parent=1 // pred_fallthru
      _
    // Predicated region
    $region46: #{critic_biconv_forward.1} parent=1 // pred_check
      _
    $region47: #{critic_biconv_forward.1} parent=1 // pred_check_branch
      %54 = sbr.rel (0) target = $region49
    $region48: #{critic_biconv_forward.1} parent=1 // pred_region
      _
    $region49: #{critic_biconv_forward.1} parent=1 // pred_fallthru
      _
    // Predicated region
    $region50: #{critic_biconv_forward.1} parent=1 // pred_check
      _
    $region51: #{critic_biconv_forward.1} parent=1 // pred_check_branch
      %56 = sbr.rel (0) target = $region53
    $region52: #{critic_biconv_forward.1} parent=1 // pred_region
      _
    $region53: #{critic_biconv_forward.1} parent=1 // pred_fallthru
      _
    // Predicated region
    $region54: #{critic_biconv_forward.1} parent=1 // pred_check
      _
    $region55: #{critic_biconv_forward.1} parent=1 // pred_check_branch
      %58 = sbr.rel (0) target = $region57
    $region56: #{critic_biconv_forward.1} parent=1 // pred_region
      %59 = dma.done [#allocation4], 2048
    $region57: #{critic_biconv_forward.1} parent=1 // pred_fallthru
      _
    %v60 = vld [vmem:[%s0] sm:$0xff]
    %v61 = vld [vmem:[%s0 + $0x8] sm:$0xff]
    %v62 = vld [vmem:[#allocation3] sm:$0xff]
    %v63 = vld [vmem:[#allocation3 + $0x8] sm:$0xff]
    %v64 = vld [vmem:[#allocation3 + $0x10] sm:$0xff]
    %v65 = vld [vmem:[#allocation3 + $0x18] sm:$0xff]
    %v66 = vld [vmem:[#allocation3 + $0x20] sm:$0xff]
    %v67 = vld [vmem:[#allocation3 + $0x28] sm:$0xff]
    %v68 = vld [vmem:[#allocation3 + $0x30] sm:$0xff]
    %v69 = vld [vmem:[#allocation3 + $0x38] sm:$0xff]
    %v70 = vld [vmem:[#allocation3 + $0x40] sm:$0xff]
    %v71 = vld [vmem:[#allocation3 + $0x48] sm:$0xff]
    %v72 = vld [vmem:[#allocation3 + $0x50] sm:$0xff]
    %v73 = vld [vmem:[#allocation3 + $0x58] sm:$0xff]
    %v74 = vld [vmem:[#allocation3 + $0x60] sm:$0xff]
    %v75 = vld [vmem:[#allocation3 + $0x68] sm:$0xff]
    %v76 = vld [vmem:[#allocation3 + $0x70] sm:$0xff]
    %v77 = vld [vmem:[#allocation3 + $0x78] sm:$0xff]
    %v78 = vld [vmem:[%s2] sm:$0x3]
    %v80 = vlaneseq
    %v81 = vshrl.u32 %v80, 7
    %v82 = vsub.s32 0, %v81
    %v83 = vrot.slane %v78, %v82
    %v84 = vlaneseq
    %v85 = vshrl.u32 %v84, 7
    %v86 = vsub.s32 1, %v85
    %v87 = vrot.slane %v78, %v86
    %vm90 = vcmask 523264
    %v92 = vsel %vm90, %v60, 0
    %v95 = vsel %vm90, %v61, 0
    %97 = vmatprep.subr.mxu0 0.0
    %98 = vmatpush1.msra.mxu0 0.0
    %99 = vmatprep.subr.mxu0 0.0
    %100 = vmatpush1.msra.mxu0 0.0
    %101 = vmatprep.subr.mxu0 0.0
    %102 = vmatpush1.msra.mxu0 0.0
    %103 = vmatprep.subr.mxu0 0.0
    %104 = vmatpush1.msra.mxu0 0.0
    %105 = vmatprep.subr.mxu0 0.0
    %106 = vmatpush1.msra.mxu0 0.0
    %107 = vmatprep.subr.mxu0 0.0
    %108 = vmatpush1.msra.mxu0 0.0
    %109 = vmatprep.subr.mxu0 0.0
    %110 = vmatpush1.msra.mxu0 0.0
    %111 = vmatprep.subr.mxu0 0.0
    %112 = vmatpush1.msra.mxu0 0.0
    %113 = vmatprep.subr.mxu0 %v77
    %114 = vmatpush1.msra.mxu0 %v76
    %115 = vmatprep.subr.mxu0 %v75
    %116 = vmatpush1.msra.mxu0 %v74
    %117 = vmatprep.subr.mxu0 %v73
    %118 = vmatpush1.msra.mxu0 %v72
    %119 = vmatprep.subr.mxu0 %v71
    %120 = vmatpush1.msra.mxu0 %v70
    %121 = vmatprep.subr.mxu0 %v69
    %122 = vmatpush1.msra.mxu0 %v68
    %123 = vmatprep.subr.mxu0 %v67
    %124 = vmatpush1.msra.mxu0 %v66
    %125 = vmatprep.subr.mxu0 %v65
    %126 = vmatpush1.msra.mxu0 %v64
    %127 = vmatprep.subr.mxu0 %v63
    %128 = vmatpush1.msra.mxu0 %v62
    %129 = vmatprep.subr.mxu0 0.0
    %130 = vmatpush2.msra.mxu0 0.0
    %131 = vmatprep.subr.mxu0 0.0
    %132 = vmatpush2.msra.mxu0 0.0
    %133 = vmatprep.subr.mxu0 0.0
    %134 = vmatpush2.msra.mxu0 0.0
    %135 = vmatprep.subr.mxu0 0.0
    %136 = vmatpush2.msra.mxu0 0.0
    %137 = vmatprep.subr.mxu0 0.0
    %138 = vmatpush2.msra.mxu0 0.0
    %139 = vmatprep.subr.mxu0 0.0
    %140 = vmatpush2.msra.mxu0 0.0
    %141 = vmatprep.subr.mxu0 0.0
    %142 = vmatpush2.msra.mxu0 0.0
    %143 = vmatprep.subr.mxu0 0.0
    %144 = vmatpush2.msra.mxu0 0.0
    %145 = vmatprep.subr.mxu0 0.0
    %146 = vmatpush2.msra.mxu0 0.0
    %147 = vmatprep.subr.mxu0 0.0
    %148 = vmatpush2.msra.mxu0 0.0
    %149 = vmatprep.subr.mxu0 0.0
    %150 = vmatpush2.msra.mxu0 0.0
    %151 = vmatprep.subr.mxu0 0.0
    %152 = vmatpush2.msra.mxu0 0.0
    %153 = vmatprep.subr.mxu0 0.0
    %154 = vmatpush2.msra.mxu0 0.0
    %155 = vmatprep.subr.mxu0 0.0
    %156 = vmatpush2.msra.mxu0 0.0
    %157 = vmatprep.subr.mxu0 0.0
    %158 = vmatpush2.msra.mxu0 0.0
    %159 = vmatprep.subr.mxu0 0.0
    %160 = vmatpush2.msra.mxu0 0.0
    %161 = vmatprep.mubr.f32.mxu0 0.0
    %162 = vmatmul.mubr.f32.gmra.mxu0 %v92
    %v163 = vpop.f32.mrf.mxu0
    %v164 = vadd.f32 %v83, %v163
    %v165 = vpop.f32.mrf.mxu0
    %v166 = vadd.f32 %v87, %v165
    %167 = vmatprep.mubr.f32.mxu0 0.0
    %168 = vmatmul.mubr.f32.gmra.mxu0 %v95
    %v169 = vpop.f32.mrf.mxu0
    %v170 = vadd.f32 %v83, %v169
    %v171 = vpop.f32.mrf.mxu0
    %v172 = vadd.f32 %v87, %v171
    %173 = vdwg.mxu0
    %vm174 = vcmp.gt.f32.partialorder %v164, 0.0
    %vm175 = vcmp.gt.f32.partialorder %v166, 0.0
    %vm176 = vcmp.gt.f32.partialorder %v170, 0.0
    %vm177 = vcmp.gt.f32.partialorder %v172, 0.0
    %v178 = vmul.f32 %v164, 0.01
    %v179 = vmul.f32 %v166, 0.01
    %v180 = vmul.f32 %v170, 0.01
    %v181 = vmul.f32 %v172, 0.01
    %v182 = vsel %vm174, %v164, %v178
    %v183 = vsel %vm175, %v166, %v179
    %v184 = vsel %vm176, %v170, %v180
    %v185 = vsel %vm177, %v172, %v181
    %v186 = vld [vmem:[%s3] sm:$0xff]
    %v187 = vld [vmem:[%s3 + $0x8] sm:$0xff]
    %v188 = vld [vmem:[%s3 + $0x10] sm:$0xff]
    %v189 = vld [vmem:[%s3 + $0x18] sm:$0xff]
    %v190 = vld [vmem:[%s3 + $0x20] sm:$0xff]
    %v191 = vld [vmem:[%s3 + $0x28] sm:$0xff]
    %v192 = vld [vmem:[%s3 + $0x30] sm:$0xff]
    %v193 = vld [vmem:[%s3 + $0x38] sm:$0xff]
    %v194 = vld [vmem:[%s3 + $0x40] sm:$0xff]
    %v195 = vld [vmem:[%s3 + $0x48] sm:$0xff]
    %v196 = vld [vmem:[%s3 + $0x50] sm:$0xff]
    %v197 = vld [vmem:[%s3 + $0x58] sm:$0xff]
    %v198 = vld [vmem:[%s3 + $0x60] sm:$0xff]
    %v199 = vld [vmem:[%s3 + $0x68] sm:$0xff]
    %v200 = vld [vmem:[%s3 + $0x70] sm:$0xff]
    %v201 = vld [vmem:[%s3 + $0x78] sm:$0xff]
    %v202 = vld [vmem:[%s3 + $0x80] sm:$0xff]
    %v203 = vld [vmem:[%s3 + $0x88] sm:$0xff]
    %v204 = vld [vmem:[%s3 + $0x90] sm:$0xff]
    %v205 = vld [vmem:[%s3 + $0x98] sm:$0xff]
    %v206 = vld [vmem:[%s3 + $0xa0] sm:$0xff]
    %v207 = vld [vmem:[%s3 + $0xa8] sm:$0xff]
    %v208 = vld [vmem:[%s3 + $0xb0] sm:$0xff]
    %v209 = vld [vmem:[%s3 + $0xb8] sm:$0xff]
    %v210 = vld [vmem:[%s3 + $0xc0] sm:$0xff]
    %v211 = vld [vmem:[%s3 + $0xc8] sm:$0xff]
    %v212 = vld [vmem:[%s3 + $0xd0] sm:$0xff]
    %v213 = vld [vmem:[%s3 + $0xd8] sm:$0xff]
    %v214 = vld [vmem:[%s3 + $0xe0] sm:$0xff]
    %v215 = vld [vmem:[%s3 + $0xe8] sm:$0xff]
    %v216 = vld [vmem:[%s3 + $0xf0] sm:$0xff]
    %v217 = vld [vmem:[%s3 + $0xf8] sm:$0xff]
    %v218 = vld [vmem:[%s4] sm:$0x1]
    %v220 = vlaneseq
    %v221 = vshrl.u32 %v220, 7
    %v222 = vsub.s32 0, %v221
    %v223 = vrot.slane %v218, %v222
    %225 = vmatprep.subr.mxu0 0.0
    %226 = vmatpush1.msra.mxu0 %v201
    %227 = vmatprep.subr.mxu0 0.0
    %228 = vmatpush1.msra.mxu0 %v200
    %229 = vmatprep.subr.mxu0 0.0
    %230 = vmatpush1.msra.mxu0 %v199
    %231 = vmatprep.subr.mxu0 0.0
    %232 = vmatpush1.msra.mxu0 %v198
    %233 = vmatprep.subr.mxu0 0.0
    %234 = vmatpush1.msra.mxu0 %v197
    %235 = vmatprep.subr.mxu0 0.0
    %236 = vmatpush1.msra.mxu0 %v196
    %237 = vmatprep.subr.mxu0 0.0
    %238 = vmatpush1.msra.mxu0 %v195
    %239 = vmatprep.subr.mxu0 0.0
    %240 = vmatpush1.msra.mxu0 %v194
    %241 = vmatprep.subr.mxu0 0.0
    %242 = vmatpush1.msra.mxu0 %v193
    %243 = vmatprep.subr.mxu0 0.0
    %244 = vmatpush1.msra.mxu0 %v192
    %245 = vmatprep.subr.mxu0 0.0
    %246 = vmatpush1.msra.mxu0 %v191
    %247 = vmatprep.subr.mxu0 0.0
    %248 = vmatpush1.msra.mxu0 %v190
    %249 = vmatprep.subr.mxu0 0.0
    %250 = vmatpush1.msra.mxu0 %v189
    %251 = vmatprep.subr.mxu0 0.0
    %252 = vmatpush1.msra.mxu0 %v188
    %253 = vmatprep.subr.mxu0 0.0
    %254 = vmatpush1.msra.mxu0 %v187
    %255 = vmatprep.subr.mxu0 0.0
    %256 = vmatpush1.msra.mxu0 %v186
    %257 = vmatprep.subr.mxu0 0.0
    %258 = vmatpush2.msra.mxu0 %v217
    %259 = vmatprep.subr.mxu0 0.0
    %260 = vmatpush2.msra.mxu0 %v216
    %261 = vmatprep.subr.mxu0 0.0
    %262 = vmatpush2.msra.mxu0 %v215
    %263 = vmatprep.subr.mxu0 0.0
    %264 = vmatpush2.msra.mxu0 %v214
    %265 = vmatprep.subr.mxu0 0.0
    %266 = vmatpush2.msra.mxu0 %v213
    %267 = vmatprep.subr.mxu0 0.0
    %268 = vmatpush2.msra.mxu0 %v212
    %269 = vmatprep.subr.mxu0 0.0
    %270 = vmatpush2.msra.mxu0 %v211
    %271 = vmatprep.subr.mxu0 0.0
    %272 = vmatpush2.msra.mxu0 %v210
    %273 = vmatprep.subr.mxu0 0.0
    %274 = vmatpush2.msra.mxu0 %v209
    %275 = vmatprep.subr.mxu0 0.0
    %276 = vmatpush2.msra.mxu0 %v208
    %277 = vmatprep.subr.mxu0 0.0
    %278 = vmatpush2.msra.mxu0 %v207
    %279 = vmatprep.subr.mxu0 0.0
    %280 = vmatpush2.msra.mxu0 %v206
    %281 = vmatprep.subr.mxu0 0.0
    %282 = vmatpush2.msra.mxu0 %v205
    %283 = vmatprep.subr.mxu0 0.0
    %284 = vmatpush2.msra.mxu0 %v204
    %285 = vmatprep.subr.mxu0 0.0
    %286 = vmatpush2.msra.mxu0 %v203
    %287 = vmatprep.subr.mxu0 0.0
    %288 = vmatpush2.msra.mxu0 %v202
    %289 = vmatprep.mubr.f32.mxu0 %v183
    %290 = vmatmul.mubr.f32.gmra.mxu0 %v182
    %v291 = vpop.f32.mrf.mxu0
    %v292 = vadd.f32 %v223, %v291
    %v293 = vpop.f32.mrf.mxu0
    %294 = vmatprep.mubr.f32.mxu0 %v185
    %295 = vmatmul.mubr.f32.gmra.mxu0 %v184
    %v296 = vpop.f32.mrf.mxu0
    %v297 = vadd.f32 %v223, %v296
    %v298 = vpop.f32.mrf.mxu0
    %299 = vdwg.mxu0
    %v300 = vmax.f32 %v292, 0.0
    %v301 = vmax.f32 %v297, 0.0
    %v302 = vld [vmem:[%s5] sm:$0xff]
    %v303 = vld [vmem:[%s5 + $0x8] sm:$0xff]
    %v304 = vld [vmem:[%s5 + $0x10] sm:$0xff]
    %v305 = vld [vmem:[%s5 + $0x18] sm:$0xff]
    %v306 = vld [vmem:[%s5 + $0x20] sm:$0xff]
    %v307 = vld [vmem:[%s5 + $0x28] sm:$0xff]
    %v308 = vld [vmem:[%s5 + $0x30] sm:$0xff]
    %v309 = vld [vmem:[%s5 + $0x38] sm:$0xff]
    %v310 = vld [vmem:[%s5 + $0x40] sm:$0xff]
    %v311 = vld [vmem:[%s5 + $0x48] sm:$0xff]
    %v312 = vld [vmem:[%s5 + $0x50] sm:$0xff]
    %v313 = vld [vmem:[%s5 + $0x58] sm:$0xff]
    %v314 = vld [vmem:[%s5 + $0x60] sm:$0xff]
    %v315 = vld [vmem:[%s5 + $0x68] sm:$0xff]
    %v316 = vld [vmem:[%s5 + $0x70] sm:$0xff]
    %v317 = vld [vmem:[%s5 + $0x78] sm:$0xff]
    %v318 = vld [vmem:[%s6] sm:$0x1]
    %v320 = vlaneseq
    %v321 = vshrl.u32 %v320, 7
    %v322 = vsub.s32 0, %v321
    %v323 = vrot.slane %v318, %v322
    %325 = vmatprep.subr.mxu0 0.0
    %326 = vmatpush1.msra.mxu0 %v317
    %327 = vmatprep.subr.mxu0 0.0
    %328 = vmatpush1.msra.mxu0 %v316
    %329 = vmatprep.subr.mxu0 0.0
    %330 = vmatpush1.msra.mxu0 %v315
    %331 = vmatprep.subr.mxu0 0.0
    %332 = vmatpush1.msra.mxu0 %v314
    %333 = vmatprep.subr.mxu0 0.0
    %334 = vmatpush1.msra.mxu0 %v313
    %335 = vmatprep.subr.mxu0 0.0
    %336 = vmatpush1.msra.mxu0 %v312
    %337 = vmatprep.subr.mxu0 0.0
    %338 = vmatpush1.msra.mxu0 %v311
    %339 = vmatprep.subr.mxu0 0.0
    %340 = vmatpush1.msra.mxu0 %v310
    %341 = vmatprep.subr.mxu0 0.0
    %342 = vmatpush1.msra.mxu0 %v309
    %343 = vmatprep.subr.mxu0 0.0
    %344 = vmatpush1.msra.mxu0 %v308
    %345 = vmatprep.subr.mxu0 0.0
    %346 = vmatpush1.msra.mxu0 %v307
    %347 = vmatprep.subr.mxu0 0.0
    %348 = vmatpush1.msra.mxu0 %v306
    %349 = vmatprep.subr.mxu0 0.0
    %350 = vmatpush1.msra.mxu0 %v305
    %351 = vmatprep.subr.mxu0 0.0
    %352 = vmatpush1.msra.mxu0 %v304
    %353 = vmatprep.subr.mxu0 0.0
    %354 = vmatpush1.msra.mxu0 %v303
    %355 = vmatprep.subr.mxu0 0.0
    %356 = vmatpush1.msra.mxu0 %v302
    %357 = vmatprep.subr.mxu0 0.0
    %358 = vmatpush2.msra.mxu0 0.0
    %359 = vmatprep.subr.mxu0 0.0
    %360 = vmatpush2.msra.mxu0 0.0
    %361 = vmatprep.subr.mxu0 0.0
    %362 = vmatpush2.msra.mxu0 0.0
    %363 = vmatprep.subr.mxu0 0.0
    %364 = vmatpush2.msra.mxu0 0.0
    %365 = vmatprep.subr.mxu0 0.0
    %366 = vmatpush2.msra.mxu0 0.0
    %367 = vmatprep.subr.mxu0 0.0
    %368 = vmatpush2.msra.mxu0 0.0
    %369 = vmatprep.subr.mxu0 0.0
    %370 = vmatpush2.msra.mxu0 0.0
    %371 = vmatprep.subr.mxu0 0.0
    %372 = vmatpush2.msra.mxu0 0.0
    %373 = vmatprep.subr.mxu0 0.0
    %374 = vmatpush2.msra.mxu0 0.0
    %375 = vmatprep.subr.mxu0 0.0
    %376 = vmatpush2.msra.mxu0 0.0
    %377 = vmatprep.subr.mxu0 0.0
    %378 = vmatpush2.msra.mxu0 0.0
    %379 = vmatprep.subr.mxu0 0.0
    %380 = vmatpush2.msra.mxu0 0.0
    %381 = vmatprep.subr.mxu0 0.0
    %382 = vmatpush2.msra.mxu0 0.0
    %383 = vmatprep.subr.mxu0 0.0
    %384 = vmatpush2.msra.mxu0 0.0
    %385 = vmatprep.subr.mxu0 0.0
    %386 = vmatpush2.msra.mxu0 0.0
    %387 = vmatprep.subr.mxu0 0.0
    %388 = vmatpush2.msra.mxu0 0.0
    %389 = vmatprep.mubr.f32.mxu0 0.0
    %390 = vmatmul.mubr.f32.gmra.mxu0 %v300
    %v391 = vpop.f32.mrf.mxu0
    %v392 = vadd.f32 %v323, %v391
    %v393 = vpop.f32.mrf.mxu0
    %394 = vmatprep.mubr.f32.mxu0 0.0
    %395 = vmatmul.mubr.f32.gmra.mxu0 %v301
    %v396 = vpop.f32.mrf.mxu0
    %v397 = vadd.f32 %v323, %v396
    %v398 = vpop.f32.mrf.mxu0
    %399 = vdwg.mxu0
    %v400 = vld [vmem:[%s7] sm:$0xff]
    %v401 = vld [vmem:[%s7 + $0x8] sm:$0xff]
    %v402 = vld [vmem:[%s7 + $0x10] sm:$0xff]
    %v403 = vld [vmem:[%s7 + $0x18] sm:$0xff]
    %v404 = vld [vmem:[%s7 + $0x20] sm:$0xff]
    %v405 = vld [vmem:[%s7 + $0x28] sm:$0xff]
    %v406 = vld [vmem:[%s7 + $0x30] sm:$0xff]
    %v407 = vld [vmem:[%s7 + $0x38] sm:$0xff]
    %v408 = vld [vmem:[%s8] sm:$0x1]
    %v410 = vlaneseq
    %v411 = vshrl.u32 %v410, 7
    %v412 = vsub.s32 0, %v411
    %v413 = vrot.slane %v408, %v412
    %v416 = vsel %vm90, %v392, 0
    %v419 = vsel %vm90, %v397, 0
    %421 = vmatprep.subr.mxu0 0.0
    %422 = vmatpush1.msra.mxu0 0.0
    %423 = vmatprep.subr.mxu0 0.0
    %424 = vmatpush1.msra.mxu0 0.0
    %425 = vmatprep.subr.mxu0 0.0
    %426 = vmatpush1.msra.mxu0 0.0
    %427 = vmatprep.subr.mxu0 0.0
    %428 = vmatpush1.msra.mxu0 0.0
    %429 = vmatprep.subr.mxu0 0.0
    %430 = vmatpush1.msra.mxu0 0.0
    %431 = vmatprep.subr.mxu0 0.0
    %432 = vmatpush1.msra.mxu0 0.0
    %433 = vmatprep.subr.mxu0 0.0
    %434 = vmatpush1.msra.mxu0 0.0
    %435 = vmatprep.subr.mxu0 0.0
    %436 = vmatpush1.msra.mxu0 0.0
    %437 = vmatprep.subr.mxu0 0.0
    %438 = vmatpush1.msra.mxu0 %v407
    %439 = vmatprep.subr.mxu0 0.0
    %440 = vmatpush1.msra.mxu0 %v406
    %441 = vmatprep.subr.mxu0 0.0
    %442 = vmatpush1.msra.mxu0 %v405
    %443 = vmatprep.subr.mxu0 0.0
    %444 = vmatpush1.msra.mxu0 %v404
    %445 = vmatprep.subr.mxu0 0.0
    %446 = vmatpush1.msra.mxu0 %v403
    %447 = vmatprep.subr.mxu0 0.0
    %448 = vmatpush1.msra.mxu0 %v402
    %449 = vmatprep.subr.mxu0 0.0
    %450 = vmatpush1.msra.mxu0 %v401
    %451 = vmatprep.subr.mxu0 0.0
    %452 = vmatpush1.msra.mxu0 %v400
    %453 = vmatprep.subr.mxu0 0.0
    %454 = vmatpush2.msra.mxu0 0.0
    %455 = vmatprep.subr.mxu0 0.0
    %456 = vmatpush2.msra.mxu0 0.0
    %457 = vmatprep.subr.mxu0 0.0
    %458 = vmatpush2.msra.mxu0 0.0
    %459 = vmatprep.subr.mxu0 0.0
    %460 = vmatpush2.msra.mxu0 0.0
    %461 = vmatprep.subr.mxu0 0.0
    %462 = vmatpush2.msra.mxu0 0.0
    %463 = vmatprep.subr.mxu0 0.0
    %464 = vmatpush2.msra.mxu0 0.0
    %465 = vmatprep.subr.mxu0 0.0
    %466 = vmatpush2.msra.mxu0 0.0
    %467 = vmatprep.subr.mxu0 0.0
    %468 = vmatpush2.msra.mxu0 0.0
    %469 = vmatprep.subr.mxu0 0.0
    %470 = vmatpush2.msra.mxu0 0.0
    %471 = vmatprep.subr.mxu0 0.0
    %472 = vmatpush2.msra.mxu0 0.0
    %473 = vmatprep.subr.mxu0 0.0
    %474 = vmatpush2.msra.mxu0 0.0
    %475 = vmatprep.subr.mxu0 0.0
    %476 = vmatpush2.msra.mxu0 0.0
    %477 = vmatprep.subr.mxu0 0.0
    %478 = vmatpush2.msra.mxu0 0.0
    %479 = vmatprep.subr.mxu0 0.0
    %480 = vmatpush2.msra.mxu0 0.0
    %481 = vmatprep.subr.mxu0 0.0
    %482 = vmatpush2.msra.mxu0 0.0
    %483 = vmatprep.subr.mxu0 0.0
    %484 = vmatpush2.msra.mxu0 0.0
    %485 = vmatprep.mubr.f32.mxu0 0.0
    %486 = vmatmul.mubr.f32.gmra.mxu0 %v416
    %v487 = vpop.f32.mrf.mxu0
    %v488 = vadd.f32 %v413, %v487
    %v489 = vpop.f32.mrf.mxu0
    %490 = vmatprep.mubr.f32.mxu0 0.0
    %491 = vmatmul.mubr.f32.gmra.mxu0 %v419
    %v492 = vpop.f32.mrf.mxu0
    %v493 = vadd.f32 %v413, %v492
    %v494 = vpop.f32.mrf.mxu0
    %495 = vdwg.mxu0
    %v496 = vmax.f32 %v488, 0.0
    %v497 = vmax.f32 %v493, 0.0
    %v498 = vld [vmem:[%s9] sm:$0xff]
    %v499 = vld [vmem:[%s9 + $0x8] sm:$0xff]
    %v500 = vld [vmem:[%s9 + $0x10] sm:$0xff]
    %v501 = vld [vmem:[%s9 + $0x18] sm:$0xff]
    %v502 = vld [vmem:[%s10] sm:$0x1]
    %v504 = vlaneseq
    %v505 = vshrl.u32 %v504, 7
    %v506 = vsub.s32 0, %v505
    %v507 = vrot.slane %v502, %v506
    %vm509 = vcmask 261120
    %v511 = vsel %vm509, %v496, 0
    %v514 = vsel %vm509, %v497, 0
    %516 = vmatprep.subr.mxu0 0.0
    %517 = vmatpush1.msra.mxu0 0.0
    %518 = vmatprep.subr.mxu0 0.0
    %519 = vmatpush1.msra.mxu0 0.0
    %520 = vmatprep.subr.mxu0 0.0
    %521 = vmatpush1.msra.mxu0 0.0
    %522 = vmatprep.subr.mxu0 0.0
    %523 = vmatpush1.msra.mxu0 0.0
    %524 = vmatprep.subr.mxu0 0.0
    %525 = vmatpush1.msra.mxu0 0.0
    %526 = vmatprep.subr.mxu0 0.0
    %527 = vmatpush1.msra.mxu0 0.0
    %528 = vmatprep.subr.mxu0 0.0
    %529 = vmatpush1.msra.mxu0 0.0
    %530 = vmatprep.subr.mxu0 0.0
    %531 = vmatpush1.msra.mxu0 0.0
    %532 = vmatprep.subr.mxu0 0.0
    %533 = vmatpush1.msra.mxu0 0.0
    %534 = vmatprep.subr.mxu0 0.0
    %535 = vmatpush1.msra.mxu0 0.0
    %536 = vmatprep.subr.mxu0 0.0
    %537 = vmatpush1.msra.mxu0 0.0
    %538 = vmatprep.subr.mxu0 0.0
    %539 = vmatpush1.msra.mxu0 0.0
    %540 = vmatprep.subr.mxu0 0.0
    %541 = vmatpush1.msra.mxu0 %v501
    %542 = vmatprep.subr.mxu0 0.0
    %543 = vmatpush1.msra.mxu0 %v500
    %544 = vmatprep.subr.mxu0 0.0
    %545 = vmatpush1.msra.mxu0 %v499
    %546 = vmatprep.subr.mxu0 0.0
    %547 = vmatpush1.msra.mxu0 %v498
    %548 = vmatprep.subr.mxu0 0.0
    %549 = vmatpush2.msra.mxu0 0.0
    %550 = vmatprep.subr.mxu0 0.0
    %551 = vmatpush2.msra.mxu0 0.0
    %552 = vmatprep.subr.mxu0 0.0
    %553 = vmatpush2.msra.mxu0 0.0
    %554 = vmatprep.subr.mxu0 0.0
    %555 = vmatpush2.msra.mxu0 0.0
    %556 = vmatprep.subr.mxu0 0.0
    %557 = vmatpush2.msra.mxu0 0.0
    %558 = vmatprep.subr.mxu0 0.0
    %559 = vmatpush2.msra.mxu0 0.0
    %560 = vmatprep.subr.mxu0 0.0
    %561 = vmatpush2.msra.mxu0 0.0
    %562 = vmatprep.subr.mxu0 0.0
    %563 = vmatpush2.msra.mxu0 0.0
    %564 = vmatprep.subr.mxu0 0.0
    %565 = vmatpush2.msra.mxu0 0.0
    %566 = vmatprep.subr.mxu0 0.0
    %567 = vmatpush2.msra.mxu0 0.0
    %568 = vmatprep.subr.mxu0 0.0
    %569 = vmatpush2.msra.mxu0 0.0
    %570 = vmatprep.subr.mxu0 0.0
    %571 = vmatpush2.msra.mxu0 0.0
    %572 = vmatprep.subr.mxu0 0.0
    %573 = vmatpush2.msra.mxu0 0.0
    %574 = vmatprep.subr.mxu0 0.0
    %575 = vmatpush2.msra.mxu0 0.0
    %576 = vmatprep.subr.mxu0 0.0
    %577 = vmatpush2.msra.mxu0 0.0
    %578 = vmatprep.subr.mxu0 0.0
    %579 = vmatpush2.msra.mxu0 0.0
    %580 = vmatprep.mubr.f32.mxu0 0.0
    %581 = vmatmul.mubr.f32.gmra.mxu0 %v511
    %v582 = vpop.f32.mrf.mxu0
    %v583 = vadd.f32 %v507, %v582
    %v584 = vpop.f32.mrf.mxu0
    %585 = vmatprep.mubr.f32.mxu0 0.0
    %586 = vmatmul.mubr.f32.gmra.mxu0 %v514
    %v587 = vpop.f32.mrf.mxu0
    %v588 = vadd.f32 %v507, %v587
    %v589 = vpop.f32.mrf.mxu0
    %590 = vdwg.mxu0
    %v591 = vadd.f32 %v583, 3.0
    %v592 = vadd.f32 %v588, 3.0
    %v593 = vmax.f32 %v591, 0.0
    %v594 = vmax.f32 %v592, 0.0
    %v595 = vmin.f32 %v593, 6.0
    %v596 = vmin.f32 %v594, 6.0
    %v597 = vmul.f32 %v583, %v595
    %v598 = vmul.f32 %v588, %v596
    %v599 = vmul.f32 %v597, 0.16666667
    %v600 = vmul.f32 %v598, 0.16666667
    %v601 = vld [vmem:[%s11] sm:$0x1]
    %v603 = vlaneseq
    %v604 = vshrl.u32 %v603, 7
    %v605 = vsub.s32 0, %v604
    %v606 = vrot.slane %v601, %v605
    %v608 = vmul.f32 %v599, %v606
    %v609 = vmul.f32 %v600, %v606
    %vm610 = vcmask 64512
    %v611 = vsel %vm610, %v608, 0.0
    %612 = vadd.xlane.f32.xlu0 %v611
    %v613 = vpop.xlane.xlu0 %612
    %v614 = vsel %vm610, %v609, 0.0
    %615 = vadd.xlane.f32.xlu0 %v614
    %v616 = vpop.xlane.xlu0 %615
    %v617 = vld [vmem:[#allocation2] sm:$0x1]
    %v619 = vlaneseq
    %v620 = vshrl.u32 %v619, 7
    %v621 = vsub.s32 0, %v620
    %v622 = vrot.slane %v617, %v621
    %v624 = vadd.f32 %v613, %v622
    %v625 = vadd.f32 %v616, %v622
    %vm626 = vcmask 7168
    %627 = vst.msk [vmem:[%s13] sm:$0xff] %vm626, %v624
    %628 = vst.msk [vmem:[%s13 + $0x8] sm:$0xff] %vm626, %v625
    // Predicated region
    $region58: #{critic_biconv_forward.1} parent=1 // pred_check
      _
    $region59: #{critic_biconv_forward.1} parent=1 // pred_check_branch
      %630 = sbr.rel (0) target = $region61
    $region60: #{critic_biconv_forward.1} parent=1 // pred_region
      _
    $region61: #{critic_biconv_forward.1} parent=1 // pred_fallthru
      _
    // Predicated region
    $region62: #{critic_biconv_forward.1} parent=1 // pred_check
      _
    $region63: #{critic_biconv_forward.1} parent=1 // pred_check_branch
      %632 = sbr.rel (0) target = $region65
    $region64: #{critic_biconv_forward.1} parent=1 // pred_region
      _
    $region65: #{critic_biconv_forward.1} parent=1 // pred_fallthru
      _
    %633 = vsyncpa [#allocation4], 1

</llo_original>
